<compile_context>
chip_gen: v6e
topology: v6e:2x2x1
jax: 0.10.0
libtpu: 0.0.40
codegen_flags: <defaults>
</compile_context>

<pallas_src>
import jax
import jax.numpy as jnp
from jax import lax
from jax.experimental import pallas as pl
from jax.experimental.pallas import tpu as pltpu
import numpy as np

# ---------------------------------------------------------------------------
# Hyper-parameters (mirrors `param` of the PyTorch module, small shapes)
# ---------------------------------------------------------------------------
B = 16             # batch (scaled up >= 8 per perf review to fill sublanes/MXU rows)
BATCH_TILE = 8     # rows per grid step (one full sublane group)
N_SENT = 8         # param.n_sent        (conv input height == Linear output size)
EMB_DIM = 32       # param.sent_emb_dim  (conv input width)
C_OUT = 4          # param.conv_channels
KH, KW = 3, 3      # param.conv_kernel_size
PH, PW = 2, 2      # param.max_pool_kernel_size

H_OUT = N_SENT - KH + 1                 # 6   valid-conv output height
W_OUT = EMB_DIM - KW + 1                # 30  valid-conv output width
P_H = (H_OUT - PH) // PH + 1            # 3   pooled height (floor mode, stride=kernel)
P_W = (W_OUT - PW) // PW + 1            # 15  pooled width
FLAT = C_OUT * P_H * P_W                # 180 output_layer_input_size
K_IN = N_SENT * EMB_DIM                 # 256 flattened embedding length
NQ = PH * PW                            # 4   pool-window offsets ("quadrants")
QPAD = ((FLAT + 127) // 128) * 128      # 256 lane-aligned quadrant width


# ---------------------------------------------------------------------------
# Kernel: one batch tile per grid step; weights stay VMEM-resident (constant
# index_map) across steps.
# ---------------------------------------------------------------------------
def _kernel(emb_ref, t_ref, cb_ref, wl_ref, lb_ref, out_ref):
    # emb_ref: (BATCH_TILE, K_IN)   flattened sentence embeddings (f32 in HBM)
    # t_ref:   (K_IN, NQ*QPAD)      bf16 conv-as-matmul weight (4 aligned quadrants)
    # cb_ref:  (1, QPAD)            conv bias (shared across the 4 quadrants)
    # wl_ref:  (QPAD, N_SENT)       output Linear weight (zero on padded rows)
    # lb_ref:  (1, N_SENT)          output Linear bias
    # out_ref: (BATCH_TILE, N_SENT) log-probabilities
    x = emb_ref[...].astype(jnp.bfloat16)            # cast in-kernel (free, bf16 MXU path)

    # Conv for every 2x2 pool-window candidate in one native bf16 MXU matmul,
    # accumulated in f32.
    conv = jnp.dot(x, t_ref[...], preferred_element_type=jnp.float32)  # (BT, 4*QPAD)

    # 2x2 / stride-2 max-pool == elementwise max over the 4 aligned quadrants.
    # Bias is identical across the 4 offsets -> add it AFTER the max (1/4 the adds).
    p01 = jnp.maximum(conv[:, 0:QPAD], conv[:, QPAD:2 * QPAD])
    p23 = jnp.maximum(conv[:, 2 * QPAD:3 * QPAD], conv[:, 3 * QPAD:4 * QPAD])
    act = jnp.maximum(jnp.maximum(p01, p23) + cb_ref[...], 0.0)        # ReLU, (BT, QPAD)

    # Output Linear layer on the MXU (padded lanes have zero weight).
    logits = jnp.dot(act, wl_ref[...], preferred_element_type=jnp.float32) + lb_ref[...]

    # log_softmax over the sentence axis, single lane-dense store.
    m = jnp.max(logits, axis=1, keepdims=True)
    z = logits - m
    lse = jnp.log(jnp.sum(jnp.exp(z), axis=1, keepdims=True))
    out_ref[...] = (z - lse).astype(out_ref.dtype)


# ---------------------------------------------------------------------------
# One-time weight repacking (host side, OUTSIDE the per-call jitted path).
# ---------------------------------------------------------------------------
def prepare_params(conv_w, conv_b, lin_w, lin_b):
    cw = np.asarray(conv_w, dtype=np.float32)   # (C_OUT, 1, KH, KW)
    cb = np.asarray(conv_b, dtype=np.float32)   # (C_OUT,)
    lw = np.asarray(lin_w, dtype=np.float32)    # (N_SENT, FLAT)
    lb = np.asarray(lin_b, dtype=np.float32)    # (N_SENT,)

    t_mat = np.zeros((K_IN, NQ * QPAD), np.float32)
    conv_bias = np.zeros((1, QPAD), np.float32)
    for rp in range(PH):
        for cp in range(PW):
            q = rp * PW + cp
            for c in range(C_OUT):
                for pi in range(P_H):
                    for pj in range(P_W):
                        # lane layout inside a quadrant == PyTorch (C,H,W) flatten order
                        in_q = c * (P_H * P_W) + pi * P_W + pj
                        lane = q * QPAD + in_q
                        i = PH * pi + rp            # conv output row
                        j = PW * pj + cp            # conv output col
                        conv_bias[0, in_q] = cb[c]
                        for di in range(KH):
                            for dj in range(KW):
                                t_mat[(i + di) * EMB_DIM + (j + dj), lane] = cw[c, 0, di, dj]

    w_lin = np.zeros((QPAD, N_SENT), np.float32)
    w_lin[:FLAT, :] = lw.T
    b_lin = lb.reshape(1, N_SENT)

    # Guard the padded-lane invariant: padded lanes must contribute exactly 0.
    for q in range(NQ):
        assert not t_mat[:, q * QPAD + FLAT:(q + 1) * QPAD].any(), "padded t_mat lanes must be 0"
    assert not conv_bias[:, FLAT:].any(), "padded conv bias lanes must be 0"
    assert not w_lin[FLAT:, :].any(), "padded linear weight rows must be 0"

    # bf16 weight for the dominant matmul/DMA; small tensors stay f32.
    return (jnp.asarray(t_mat, dtype=jnp.bfloat16), jnp.asarray(conv_bias),
            jnp.asarray(w_lin), jnp.asarray(b_lin))


# ---------------------------------------------------------------------------
# Jitted forward: a free reshape plus the single pallas_call (1-D batch grid).
# ---------------------------------------------------------------------------
@jax.jit
def sentence_extractor_forward(emb, t_mat, conv_bias, w_lin, b_lin):
    # TODO(synk): nn.Dropout (conv_dropout / output_dropout) is identity at
    # inference and is therefore omitted (no stochastic dropout in the kernel).
    nb, ns, ed = emb.shape
    emb2 = emb.reshape(nb, ns * ed)          # row-major, no data movement, no dtype cast
    grid = (nb // BATCH_TILE,)
    return pl.pallas_call(
        _kernel,
        out_shape=jax.ShapeDtypeStruct((nb, N_SENT), jnp.float32),
        grid=grid,
        in_specs=[
            pl.BlockSpec((BATCH_TILE, K_IN), lambda i: (i, 0)),      # batch-tiled activations
            pl.BlockSpec((K_IN, NQ * QPAD), lambda i: (0, 0)),       # weights: constant index ->
            pl.BlockSpec((1, QPAD), lambda i: (0, 0)),               #   VMEM-resident across steps
            pl.BlockSpec((QPAD, N_SENT), lambda i: (0, 0)),
            pl.BlockSpec((1, N_SENT), lambda i: (0, 0)),
        ],
        out_specs=pl.BlockSpec((BATCH_TILE, N_SENT), lambda i: (i, 0)),
        compiler_params=pltpu.CompilerParams(dimension_semantics=("parallel",)),
    )(emb2, t_mat, conv_bias, w_lin, b_lin)


# ---------------------------------------------------------------------------
# Pure-JAX reference matching the PyTorch forward (eval mode, f32).
# ---------------------------------------------------------------------------
def reference(emb, conv_w, conv_b, lin_w, lin_b):
    x = emb[:, None, :, :]                                # NCHW, C=1
    y = lax.conv_general_dilated(x, conv_w, (1, 1), "VALID",
                                 dimension_numbers=("NCHW", "OIHW", "NCHW"),
                                 precision=lax.Precision.HIGHEST)
    y = y + conv_b[None, :, None, None]
    y = lax.reduce_window(y, -jnp.inf, lax.max,
                          (1, 1, PH, PW), (1, 1, PH, PW), "VALID")
    y = jnp.maximum(y, 0.0)
    flat = y.reshape(emb.shape[0], -1)
    logits = jnp.dot(flat, lin_w.T, precision=lax.Precision.HIGHEST) + lin_b
    return jax.nn.log_softmax(logits, axis=1)


if __name__ == "__main__":
    key = jax.random.PRNGKey(0)
    k1, k2, k3, k4, k5 = jax.random.split(key, 5)

    # TODO(synk): SentenceTransformer('bert-base-nli-mean-tokens').encode has no
    # Pallas equivalent; the kernel consumes precomputed sentence embeddings.
    emb = jax.random.normal(k1, (B, N_SENT, EMB_DIM), jnp.float32)
    conv_w = jax.random.normal(k2, (C_OUT, 1, KH, KW), jnp.float32) * 0.2
    conv_b = jax.random.normal(k3, (C_OUT,), jnp.float32) * 0.1
    lin_w = jax.random.normal(k4, (N_SENT, FLAT), jnp.float32) * 0.05
    lin_b = jax.random.normal(k5, (N_SENT,), jnp.float32) * 0.1

    # One-time weight repack (hoisted out of the forward path).
    t_mat, conv_bias, w_lin, b_lin = prepare_params(conv_w, conv_b, lin_w, lin_b)

    out = sentence_extractor_forward(emb, t_mat, conv_bias, w_lin, b_lin)
    out = jax.block_until_ready(out)

    ref = reference(emb, conv_w, conv_b, lin_w, lin_b)
    # Tolerance budgets for the bf16 weight/activation quantization of the
    # first matmul (f32 accumulation) vs. the HIGHEST-precision f32 reference.
    np.testing.assert_allclose(np.asarray(out), np.asarray(ref), rtol=2e-2, atol=2e-2)
    print("KERNEL_OK")
</pallas_src>

<mosaic_0001>
module attributes {stable_mosaic.version = 11 : i64} {
  func.func @_kernel(%arg0: i32, %arg1: memref<8x256xf32, #tpu.memory_space<vmem>>, %arg2: memref<256x1024xbf16, #tpu.memory_space<vmem>>, %arg3: memref<1x256xf32, #tpu.memory_space<vmem>>, %arg4: memref<256x8xf32, #tpu.memory_space<vmem>>, %arg5: memref<1x8xf32, #tpu.memory_space<vmem>>, %arg6: memref<8x8xf32, #tpu.memory_space<vmem>>) attributes {dimension_semantics = [#tpu.dimension_semantics<parallel>], iteration_bounds = array<i64: 2>, scalar_prefetch = 0 : i64, scratch_operands = 0 : i64, tpu.core_type = #tpu.core_type<tc>, window_params = [{transform_indices = @transform_0, window_bounds = array<i64: 8, 256>}, {pipeline_mode = #tpu.pipeline_mode<synchronous>, transform_indices = @transform_1, window_bounds = array<i64: 256, 1024>}, {pipeline_mode = #tpu.pipeline_mode<synchronous>, transform_indices = @transform_2, window_bounds = array<i64: 1, 256>}, {pipeline_mode = #tpu.pipeline_mode<synchronous>, transform_indices = @transform_3, window_bounds = array<i64: 256, 8>}, {pipeline_mode = #tpu.pipeline_mode<synchronous>, transform_indices = @transform_4, window_bounds = array<i64: 1, 8>}, {transform_indices = @transform_5, window_bounds = array<i64: 8, 8>}]} {
    %c0 = arith.constant 0 : index
    %c0_0 = arith.constant 0 : index
    %0 = vector.load %arg1[%c0, %c0_0] : memref<8x256xf32, #tpu.memory_space<vmem>>, vector<8x256xf32>
    %1 = arith.truncf %0 : vector<8x256xf32> to vector<8x256xbf16>
    %c0_1 = arith.constant 0 : index
    %c0_2 = arith.constant 0 : index
    %2 = vector.load %arg2[%c0_1, %c0_2] : memref<256x1024xbf16, #tpu.memory_space<vmem>>, vector<256x1024xbf16>
    %cst = arith.constant dense<0.000000e+00> : vector<8x1024xf32>
    %3 = tpu.matmul %1, %2, %cst {dimension_numbers = #tpu.dot_dimension_numbers<[1], [0], [0], [1], [0, 0, 1, 1], [], []>} : vector<8x256xbf16>, vector<256x1024xbf16>, vector<8x1024xf32> -> vector<8x1024xf32>
    %4 = vector.extract_strided_slice %3 {offsets = [0, 0], sizes = [8, 256], strides = [1, 1]} : vector<8x1024xf32> to vector<8x256xf32>
    %5 = vector.extract_strided_slice %3 {offsets = [0, 256], sizes = [8, 256], strides = [1, 1]} : vector<8x1024xf32> to vector<8x256xf32>
    %6 = arith.maximumf %4, %5 : vector<8x256xf32>
    %7 = vector.extract_strided_slice %3 {offsets = [0, 512], sizes = [8, 256], strides = [1, 1]} : vector<8x1024xf32> to vector<8x256xf32>
    %8 = vector.extract_strided_slice %3 {offsets = [0, 768], sizes = [8, 256], strides = [1, 1]} : vector<8x1024xf32> to vector<8x256xf32>
    %9 = arith.maximumf %7, %8 : vector<8x256xf32>
    %10 = arith.maximumf %6, %9 : vector<8x256xf32>
    %c0_3 = arith.constant 0 : index
    %c0_4 = arith.constant 0 : index
    %11 = vector.load %arg3[%c0_3, %c0_4] : memref<1x256xf32, #tpu.memory_space<vmem>>, vector<1x256xf32>
    %12 = vector.broadcast %11 : vector<1x256xf32> to vector<8x256xf32>
    %13 = arith.addf %10, %12 : vector<8x256xf32>
    %cst_5 = arith.constant 0.000000e+00 : f32
    %14 = vector.broadcast %cst_5 : f32 to vector<8x256xf32>
    %15 = arith.maximumf %13, %14 : vector<8x256xf32>
    %c0_6 = arith.constant 0 : index
    %c0_7 = arith.constant 0 : index
    %16 = vector.load %arg4[%c0_6, %c0_7] : memref<256x8xf32, #tpu.memory_space<vmem>>, vector<256x8xf32>
    %cst_8 = arith.constant dense<0.000000e+00> : vector<8x8xf32>
    %17 = tpu.matmul %15, %16, %cst_8 {dimension_numbers = #tpu.dot_dimension_numbers<[1], [0], [0], [1], [0, 0, 1, 1], [], []>} : vector<8x256xf32>, vector<256x8xf32>, vector<8x8xf32> -> vector<8x8xf32>
    %c0_9 = arith.constant 0 : index
    %c0_10 = arith.constant 0 : index
    %18 = vector.load %arg5[%c0_9, %c0_10] : memref<1x8xf32, #tpu.memory_space<vmem>>, vector<1x8xf32>
    %19 = vector.broadcast %18 : vector<1x8xf32> to vector<8x8xf32>
    %20 = arith.addf %17, %19 : vector<8x8xf32>
    %cst_11 = arith.constant dense<0xFF800000> : vector<8xf32>
    %21 = vector.multi_reduction <maximumf>, %20, %cst_11 [1] : vector<8x8xf32> to vector<8xf32>
    %22 = vector.shape_cast %21 : vector<8xf32> to vector<8x1xf32>
    %23 = vector.broadcast %22 : vector<8x1xf32> to vector<8x8xf32>
    %24 = arith.subf %20, %23 : vector<8x8xf32>
    %25 = math.exp %24 : vector<8x8xf32>
    %cst_12 = arith.constant dense<0.000000e+00> : vector<8xf32>
    %26 = vector.multi_reduction <add>, %25, %cst_12 [1] : vector<8x8xf32> to vector<8xf32>
    %27 = vector.shape_cast %26 : vector<8xf32> to vector<8x1xf32>
    %28 = math.log %27 : vector<8x1xf32>
    %29 = vector.broadcast %28 : vector<8x1xf32> to vector<8x8xf32>
    %30 = arith.subf %24, %29 : vector<8x8xf32>
    %c0_13 = arith.constant 0 : index
    %c0_14 = arith.constant 0 : index
    %31 = vector.load %arg6[%c0_13, %c0_14] : memref<8x8xf32, #tpu.memory_space<vmem>>, vector<8x8xf32>
    tpu.vector_store %arg6[%c0_13, %c0_14], %30 {strides = array<i32>} : memref<8x8xf32, #tpu.memory_space<vmem>>, vector<8x8xf32>,
    return
  }
  func.func @transform_0(%arg0: i32) -> (i32, i32) {
    %c0_i32 = arith.constant 0 : i32
    %c0_i32_0 = arith.constant 0 : i32
    return %arg0, %c0_i32 : i32, i32
  }
  func.func @transform_1(%arg0: i32) -> (i32, i32) {
    %c0_i32 = arith.constant 0 : i32
    %c0_i32_0 = arith.constant 0 : i32
    %c0_i32_1 = arith.constant 0 : i32
    return %c0_i32, %c0_i32_0 : i32, i32
  }
  func.func @transform_2(%arg0: i32) -> (i32, i32) {
    %c0_i32 = arith.constant 0 : i32
    %c0_i32_0 = arith.constant 0 : i32
    %c0_i32_1 = arith.constant 0 : i32
    return %c0_i32, %c0_i32_0 : i32, i32
  }
  func.func @transform_3(%arg0: i32) -> (i32, i32) {
    %c0_i32 = arith.constant 0 : i32
    %c0_i32_0 = arith.constant 0 : i32
    %c0_i32_1 = arith.constant 0 : i32
    return %c0_i32, %c0_i32_0 : i32, i32
  }
  func.func @transform_4(%arg0: i32) -> (i32, i32) {
    %c0_i32 = arith.constant 0 : i32
    %c0_i32_0 = arith.constant 0 : i32
    %c0_i32_1 = arith.constant 0 : i32
    return %c0_i32, %c0_i32_0 : i32, i32
  }
  func.func @transform_5(%arg0: i32) -> (i32, i32) {
    %c0_i32 = arith.constant 0 : i32
    %c0_i32_0 = arith.constant 0 : i32
    return %arg0, %c0_i32 : i32, i32
  }
}

</mosaic_0001>

<llo_original>
// kernel: sentence_extractor_forward.1
$region0: #{sentence_extractor_forward.1}
  #allocation0 [shape = 'u32[]', space=smem, size = 0x4, offset = 0x4, fixed_abs, tag = 'smem constant byte address 0x4 - core index']
  #allocation1 [shape = 'u32[144,128]{1,0:T(1,128)}', space=vmem, size = 0x12000, scoped, tag = 'internal scratch']
  %s0 = inlined_call_operand.vmem [shape: f32[16,256], index: 0, kind: input, shape index: {}]
  %s1 = inlined_call_operand.hbm [shape: bf16[256,1024], index: 1, kind: input, shape index: {}]
  %s2 = inlined_call_operand.vmem [shape: f32[1,256], index: 2, kind: input, shape index: {}]
  %s3 = inlined_call_operand.vmem [shape: f32[256,8], index: 3, kind: input, shape index: {}]
  %s4 = inlined_call_operand.vmem [shape: f32[1,8], index: 4, kind: input, shape index: {}]
  %s5 = inlined_call_operand.vmem [shape: f32[16,8], index: 5, kind: output, shape index: {}]
  %s6 = sld [smem:[#allocation0]]
  $region57: #{sentence_extractor_forward.1} parent=0
    _
  %s8 = ssub.s32 1, %s6
  %s9 = scalar_select 0, %s8, %s6
  $region1: #{sentence_extractor_forward.1} parent=0
    #allocation2 [shape = 'u8[524288]{0}', space=vmem, size = 0x80000, scoped, tag = 'input window, operand 1, single buffered']
    #allocation3 [shape = 's32[2]{0}', space=sflag, size = 0x8, scoped, tag = 'scoped memory for sentence_extractor_forward.1']
    %10 = vsyncpa [#allocation3], 0
    loop: start=0, step=1, limit=4
    $region2: #{sentence_extractor_forward.1} parent=1 // loop_pre_header
      _
    $region3: #{sentence_extractor_forward.1} parent=1 // loop_header
      %s12 = sphi 0, %s16
      %p13 = scmp.ge.s32.totalorder %s12, 4
      %s22 = sphi 0, %s24
      %s25 = sphi 0, %s22
      %s26 = sphi 0, %s25
      %s42 = sphi 0, %s26
      %s46 = sphi 0, %s46
      %s48 = sphi 0, %s46
      %s49 = sphi 0, %s48
      %s63 = sphi 0, %s49
      %s67 = sphi 0, %s67
      %s69 = sphi 0, %s67
      %s70 = sphi 0, %s69
      %s84 = sphi 0, %s70
      %s88 = sphi 0, %s88
      %s90 = sphi 0, %s88
      %s91 = sphi 0, %s90
      %s105 = sphi 0, %s91
      %s109 = sphi 0, %s109
      %s111 = sphi 0, %s109
      %s112 = sphi 0, %s111
      %s126 = sphi 0, %s112
      %s132 = sphi 0, %s134
      %s135 = sphi 0, %s132
      %s136 = sphi 0, %s135
      %s152 = sphi 0, %s136
    $region4: #{sentence_extractor_forward.1} parent=1 // loop_header_branch
      %15 = sbr.rel (%p13) target = $region8
    $region5: #{sentence_extractor_forward.1} parent=1 // loop_body
      %s17 = ssub.s32 %s12, 1
      %s18 = ssub.s32 %s12, 2
      %s19 = sadd.s32 %s12, 1
      %s20 = ssub.s32 %s12, %s19
      %p21 = scmp.eq.s32.totalorder %s20, 0
      %s23 = sadd.s32 %s22, 1
      %s24 = scalar_select %p21, %s22, %s23
      %p27 = pneg %p21
      %p28 = scmp.eq.s32.totalorder %s12, 1
      %p29 = por %p27, %p28
      %p30 = scmp.ne.s32.totalorder %s22, %s25
      %p31 = scmp.eq.s32.totalorder %s12, 0
      %p32 = por %p30, %p31
      %p33 = scmp.ne.s32.totalorder %s22, %s25
      %p34 = scmp.eq.s32.totalorder %s17, 1
      %p35 = por %p33, %p34
      %p36 = scmp.ne.s32.totalorder %s25, %s26
      %p37 = scmp.eq.s32.totalorder %s17, 0
      %p38 = por %p36, %p37
      %p39 = scmp.ne.s32.totalorder %s25, %s26
      %p40 = scmp.eq.s32.totalorder %s18, 1
      %p41 = por %p39, %p40
      %p43 = scmp.ne.s32.totalorder %s26, %s42
      %p44 = scmp.eq.s32.totalorder %s18, 0
      %p45 = por %p43, %p44
      %s47 = sadd.s32 %s46, 1
      %p50 = scmp.eq.s32.totalorder %s12, 1
      %p51 = scmp.ne.s32.totalorder %s46, %s48
      %p52 = scmp.eq.s32.totalorder %s12, 0
      %p53 = por %p51, %p52
      %p54 = scmp.ne.s32.totalorder %s46, %s48
      %p55 = scmp.eq.s32.totalorder %s17, 1
      %p56 = por %p54, %p55
      %p57 = scmp.ne.s32.totalorder %s48, %s49
      %p58 = scmp.eq.s32.totalorder %s17, 0
      %p59 = por %p57, %p58
      %p60 = scmp.ne.s32.totalorder %s48, %s49
      %p61 = scmp.eq.s32.totalorder %s18, 1
      %p62 = por %p60, %p61
      %p64 = scmp.ne.s32.totalorder %s49, %s63
      %p65 = scmp.eq.s32.totalorder %s18, 0
      %p66 = por %p64, %p65
      %s68 = sadd.s32 %s67, 1
      %p71 = scmp.eq.s32.totalorder %s12, 1
      %p72 = scmp.ne.s32.totalorder %s67, %s69
      %p73 = scmp.eq.s32.totalorder %s12, 0
      %p74 = por %p72, %p73
      %p75 = scmp.ne.s32.totalorder %s67, %s69
      %p76 = scmp.eq.s32.totalorder %s17, 1
      %p77 = por %p75, %p76
      %p78 = scmp.ne.s32.totalorder %s69, %s70
      %p79 = scmp.eq.s32.totalorder %s17, 0
      %p80 = por %p78, %p79
      %p81 = scmp.ne.s32.totalorder %s69, %s70
      %p82 = scmp.eq.s32.totalorder %s18, 1
      %p83 = por %p81, %p82
      %p85 = scmp.ne.s32.totalorder %s70, %s84
      %p86 = scmp.eq.s32.totalorder %s18, 0
      %p87 = por %p85, %p86
      %s89 = sadd.s32 %s88, 1
      %p92 = scmp.eq.s32.totalorder %s12, 1
      %p93 = scmp.ne.s32.totalorder %s88, %s90
      %p94 = scmp.eq.s32.totalorder %s12, 0
      %p95 = por %p93, %p94
      %p96 = scmp.ne.s32.totalorder %s88, %s90
      %p97 = scmp.eq.s32.totalorder %s17, 1
      %p98 = por %p96, %p97
      %p99 = scmp.ne.s32.totalorder %s90, %s91
      %p100 = scmp.eq.s32.totalorder %s17, 0
      %p101 = por %p99, %p100
      %p102 = scmp.ne.s32.totalorder %s90, %s91
      %p103 = scmp.eq.s32.totalorder %s18, 1
      %p104 = por %p102, %p103
      %p106 = scmp.ne.s32.totalorder %s91, %s105
      %p107 = scmp.eq.s32.totalorder %s18, 0
      %p108 = por %p106, %p107
      %s110 = sadd.s32 %s109, 1
      %p113 = scmp.eq.s32.totalorder %s12, 1
      %p114 = scmp.ne.s32.totalorder %s109, %s111
      %p115 = scmp.eq.s32.totalorder %s12, 0
      %p116 = por %p114, %p115
      %p117 = scmp.ne.s32.totalorder %s109, %s111
      %p118 = scmp.eq.s32.totalorder %s17, 1
      %p119 = por %p117, %p118
      %p120 = scmp.ne.s32.totalorder %s111, %s112
      %p121 = scmp.eq.s32.totalorder %s17, 0
      %p122 = por %p120, %p121
      %p123 = scmp.ne.s32.totalorder %s111, %s112
      %p124 = scmp.eq.s32.totalorder %s18, 1
      %p125 = por %p123, %p124
      %p127 = scmp.ne.s32.totalorder %s112, %s126
      %p128 = scmp.eq.s32.totalorder %s18, 0
      %p129 = por %p127, %p128
      %s130 = ssub.s32 %s12, %s19
      %p131 = scmp.eq.s32.totalorder %s130, 0
      %s133 = sadd.s32 %s132, 1
      %s134 = scalar_select %p131, %s132, %s133
      %p137 = pneg %p131
      %p138 = scmp.eq.s32.totalorder %s12, 1
      %p139 = por %p137, %p138
      %p140 = scmp.ne.s32.totalorder %s132, %s135
      %p141 = scmp.eq.s32.totalorder %s12, 0
      %p142 = por %p140, %p141
      %p143 = scmp.ne.s32.totalorder %s132, %s135
      %p144 = scmp.eq.s32.totalorder %s17, 1
      %p145 = por %p143, %p144
      %p146 = scmp.ne.s32.totalorder %s135, %s136
      %p147 = scmp.eq.s32.totalorder %s17, 0
      %p148 = por %p146, %p147
      %p149 = scmp.ne.s32.totalorder %s135, %s136
      %p150 = scmp.eq.s32.totalorder %s18, 1
      %p151 = por %p149, %p150
      %p153 = scmp.ne.s32.totalorder %s136, %s152
      %p154 = scmp.eq.s32.totalorder %s18, 0
      %p155 = por %p153, %p154
      %p156 = scmp.le.s32.totalorder 1, %s12
      %p157 = scmp.lt.s32.totalorder %s12, 3
      %p158 = pnand %p156, %p157
      %p159 = pneg %p158
      // Predicated region
      $region9: #{sentence_extractor_forward.1} parent=5 // pred_check
        _
      $region10: #{sentence_extractor_forward.1} parent=5 // pred_check_branch
        %161 = sbr.rel (%p158) target = $region12
      $region11: #{sentence_extractor_forward.1} parent=5 // pred_region
        %s162 = ssub.s32 %s12, 1
        // Predicated region
        $region13: #{sentence_extractor_forward.1} parent=11 // pred_check
          %p163 = pneg %p59
        $region14: #{sentence_extractor_forward.1} parent=11 // pred_check_branch
          %165 = sbr.rel (%p163) target = $region16
        $region15: #{sentence_extractor_forward.1} parent=11 // pred_region
          %s167 = ssub.s32 16384, 16384
          %168 = vsyncadd [#allocation3], %s167
          %s169 = sshll.u32 [#allocation2], 4
          %s170 = int_to_ptr.vmem [resolvable:$true] %s169
          %175 = dma.hbm_to_vmem [thread:$0]  %s1, 16384, %s170, [#allocation3], 512, 512, 32
        $region16: #{sentence_extractor_forward.1} parent=11 // pred_fallthru
          _
        // Predicated region
        $region17: #{sentence_extractor_forward.1} parent=11 // pred_check
          %p176 = pneg %p80
        $region18: #{sentence_extractor_forward.1} parent=11 // pred_check_branch
          %178 = sbr.rel (%p176) target = $region20
        $region19: #{sentence_extractor_forward.1} parent=11 // pred_region
          _
        $region20: #{sentence_extractor_forward.1} parent=11 // pred_fallthru
          _
        // Predicated region
        $region21: #{sentence_extractor_forward.1} parent=11 // pred_check
          %p179 = pneg %p101
        $region22: #{sentence_extractor_forward.1} parent=11 // pred_check_branch
          %181 = sbr.rel (%p179) target = $region24
        $region23: #{sentence_extractor_forward.1} parent=11 // pred_region
          _
        $region24: #{sentence_extractor_forward.1} parent=11 // pred_fallthru
          _
        // Predicated region
        $region25: #{sentence_extractor_forward.1} parent=11 // pred_check
          %p182 = pneg %p122
        $region26: #{sentence_extractor_forward.1} parent=11 // pred_check_branch
          %184 = sbr.rel (%p182) target = $region28
        $region27: #{sentence_extractor_forward.1} parent=11 // pred_region
          _
        $region28: #{sentence_extractor_forward.1} parent=11 // pred_fallthru
          _
      $region12: #{sentence_extractor_forward.1} parent=5 // pred_fallthru
        _
      %p185 = scmp.lt.s32.totalorder %s12, 2
      // Predicated region
      $region29: #{sentence_extractor_forward.1} parent=5 // pred_check
        %p186 = pneg %p185
      $region30: #{sentence_extractor_forward.1} parent=5 // pred_check_branch
        %188 = sbr.rel (%p186) target = $region32
      $region31: #{sentence_extractor_forward.1} parent=5 // pred_region
        // Predicated region
        $region33: #{sentence_extractor_forward.1} parent=31 // pred_check
          %p189 = pneg %p32
        $region34: #{sentence_extractor_forward.1} parent=31 // pred_check_branch
          %191 = sbr.rel (%p189) target = $region36
        $region35: #{sentence_extractor_forward.1} parent=31 // pred_region
          %p192 = scmp.lt.s32.totalorder %s12, 1
          %s193 = scalar_select %p192, %s12, 1
          %s194 = smul.addr %s193, 2
          %s195 = smul.addr %s194, 8
          %s196 = scalar_lea.vmem %s0, %s195
        $region36: #{sentence_extractor_forward.1} parent=31 // pred_fallthru
          _
      $region32: #{sentence_extractor_forward.1} parent=5 // pred_fallthru
        _
      %p197 = scmp.le.s32.totalorder 1, %s12
      %p198 = scmp.lt.s32.totalorder %s12, 3
      %p199 = pnand %p197, %p198
      %p200 = pneg %p199
      // Predicated region
      $region37: #{sentence_extractor_forward.1} parent=5 // pred_check
        _
      $region38: #{sentence_extractor_forward.1} parent=5 // pred_check_branch
        %202 = sbr.rel (%p199) target = $region40
      $region39: #{sentence_extractor_forward.1} parent=5 // pred_region
        %s203 = ssub.s32 %s12, 1
        // Predicated region
        $region41: #{sentence_extractor_forward.1} parent=39 // pred_check
          %p204 = pneg %p59
        $region42: #{sentence_extractor_forward.1} parent=39 // pred_check_branch
          %206 = sbr.rel (%p204) target = $region44
        $region43: #{sentence_extractor_forward.1} parent=39 // pred_region
          %207 = dma.done [#allocation3], 16384
        $region44: #{sentence_extractor_forward.1} parent=39 // pred_fallthru
          _
        %p208 = scmp.lt.s32.totalorder %s17, 1
        %s209 = scalar_select %p208, %s17, 1
        %s210 = smul.addr %s209, 2
        %s211 = smul.addr %s210, 8
        %s212 = scalar_lea.vmem %s0, %s211
        %p213 = pneg %p38
        %p214 = pneg %p35
        %p215 = pneg %p59
        %p216 = pneg %p56
        %p217 = pneg %p80
        %p218 = pneg %p77
        %p219 = pneg %p101
        %p220 = pneg %p98
        %p221 = pneg %p122
        %p222 = pneg %p119
        %p223 = pneg %p148
        %p224 = pneg %p145
        %p225 = scmp.lt.s32.totalorder %s17, 1
        %s226 = scalar_select %p225, %s17, 1
        %s227 = smul.addr %s226, 8
        %s228 = scalar_lea.vmem %s5, %s227
        %p229 = scmp.lt.s32.totalorder %s17, 1
        %s230 = scalar_select %p229, %s17, 1
        %s231 = smul.addr %s230, 2
        %s232 = smul.addr %s231, 8
        %s233 = scalar_lea.vmem %s0, %s232
        %p234 = scmp.lt.s32.totalorder %s17, 1
        %s235 = scalar_select %p234, %s17, 1
        %s236 = smul.addr %s235, 8
        %s237 = scalar_lea.vmem %s5, %s236
        %v238 = vld [vmem:[%s233] sm:$0xff]
        %v239 = vld [vmem:[%s233 + $0x8] sm:$0xff]
        %v240 = vpack.c.bf16 %v238, %v238
        %v241 = vpack.c.bf16 %v239, %v239
        %v242 = vld [vmem:[#allocation2] sm:$0xff]
        %v243 = vld [vmem:[#allocation2 + $0x8] sm:$0xff]
        %v244 = vld [vmem:[#allocation2 + $0x10] sm:$0xff]
        %v245 = vld [vmem:[#allocation2 + $0x18] sm:$0xff]
        %v246 = vld [vmem:[#allocation2 + $0x20] sm:$0xff]
        %v247 = vld [vmem:[#allocation2 + $0x28] sm:$0xff]
        %v248 = vld [vmem:[#allocation2 + $0x30] sm:$0xff]
        %v249 = vld [vmem:[#allocation2 + $0x38] sm:$0xff]
        %v250 = vld [vmem:[#allocation2 + $0x40] sm:$0xff]
        %v251 = vld [vmem:[#allocation2 + $0x48] sm:$0xff]
        %v252 = vld [vmem:[#allocation2 + $0x50] sm:$0xff]
        %v253 = vld [vmem:[#allocation2 + $0x58] sm:$0xff]
        %v254 = vld [vmem:[#allocation2 + $0x60] sm:$0xff]
        %v255 = vld [vmem:[#allocation2 + $0x68] sm:$0xff]
        %v256 = vld [vmem:[#allocation2 + $0x70] sm:$0xff]
        %v257 = vld [vmem:[#allocation2 + $0x78] sm:$0xff]
        %v258 = vld [vmem:[#allocation2 + $0x80] sm:$0xff]
        %v259 = vld [vmem:[#allocation2 + $0x88] sm:$0xff]
        %v260 = vld [vmem:[#allocation2 + $0x90] sm:$0xff]
        %v261 = vld [vmem:[#allocation2 + $0x98] sm:$0xff]
        %v262 = vld [vmem:[#allocation2 + $0xa0] sm:$0xff]
        %v263 = vld [vmem:[#allocation2 + $0xa8] sm:$0xff]
        %v264 = vld [vmem:[#allocation2 + $0xb0] sm:$0xff]
        %v265 = vld [vmem:[#allocation2 + $0xb8] sm:$0xff]
        %v266 = vld [vmem:[#allocation2 + $0xc0] sm:$0xff]
        %v267 = vld [vmem:[#allocation2 + $0xc8] sm:$0xff]
        %v268 = vld [vmem:[#allocation2 + $0xd0] sm:$0xff]
        %v269 = vld [vmem:[#allocation2 + $0xd8] sm:$0xff]
        %v270 = vld [vmem:[#allocation2 + $0xe0] sm:$0xff]
        %v271 = vld [vmem:[#allocation2 + $0xe8] sm:$0xff]
        %v272 = vld [vmem:[#allocation2 + $0xf0] sm:$0xff]
        %v273 = vld [vmem:[#allocation2 + $0xf8] sm:$0xff]
        %v274 = vld [vmem:[#allocation2 + $0x100] sm:$0xff]
        %v275 = vld [vmem:[#allocation2 + $0x108] sm:$0xff]
        %v276 = vld [vmem:[#allocation2 + $0x110] sm:$0xff]
        %v277 = vld [vmem:[#allocation2 + $0x118] sm:$0xff]
        %v278 = vld [vmem:[#allocation2 + $0x120] sm:$0xff]
        %v279 = vld [vmem:[#allocation2 + $0x128] sm:$0xff]
        %v280 = vld [vmem:[#allocation2 + $0x130] sm:$0xff]
        %v281 = vld [vmem:[#allocation2 + $0x138] sm:$0xff]
        %v282 = vld [vmem:[#allocation2 + $0x140] sm:$0xff]
        %v283 = vld [vmem:[#allocation2 + $0x148] sm:$0xff]
        %v284 = vld [vmem:[#allocation2 + $0x150] sm:$0xff]
        %v285 = vld [vmem:[#allocation2 + $0x158] sm:$0xff]
        %v286 = vld [vmem:[#allocation2 + $0x160] sm:$0xff]
        %v287 = vld [vmem:[#allocation2 + $0x168] sm:$0xff]
        %v288 = vld [vmem:[#allocation2 + $0x170] sm:$0xff]
        %v289 = vld [vmem:[#allocation2 + $0x178] sm:$0xff]
        %v290 = vld [vmem:[#allocation2 + $0x180] sm:$0xff]
        %v291 = vld [vmem:[#allocation2 + $0x188] sm:$0xff]
        %v292 = vld [vmem:[#allocation2 + $0x190] sm:$0xff]
        %v293 = vld [vmem:[#allocation2 + $0x198] sm:$0xff]
        %v294 = vld [vmem:[#allocation2 + $0x1a0] sm:$0xff]
        %v295 = vld [vmem:[#allocation2 + $0x1a8] sm:$0xff]
        %v296 = vld [vmem:[#allocation2 + $0x1b0] sm:$0xff]
        %v297 = vld [vmem:[#allocation2 + $0x1b8] sm:$0xff]
        %v298 = vld [vmem:[#allocation2 + $0x1c0] sm:$0xff]
        %v299 = vld [vmem:[#allocation2 + $0x1c8] sm:$0xff]
        %v300 = vld [vmem:[#allocation2 + $0x1d0] sm:$0xff]
        %v301 = vld [vmem:[#allocation2 + $0x1d8] sm:$0xff]
        %v302 = vld [vmem:[#allocation2 + $0x1e0] sm:$0xff]
        %v303 = vld [vmem:[#allocation2 + $0x1e8] sm:$0xff]
        %v304 = vld [vmem:[#allocation2 + $0x1f0] sm:$0xff]
        %v305 = vld [vmem:[#allocation2 + $0x1f8] sm:$0xff]
        %v306 = vld [vmem:[#allocation2 + $0x200] sm:$0xff]
        %v307 = vld [vmem:[#allocation2 + $0x208] sm:$0xff]
        %v308 = vld [vmem:[#allocation2 + $0x210] sm:$0xff]
        %v309 = vld [vmem:[#allocation2 + $0x218] sm:$0xff]
        %v310 = vld [vmem:[#allocation2 + $0x220] sm:$0xff]
        %v311 = vld [vmem:[#allocation2 + $0x228] sm:$0xff]
        %v312 = vld [vmem:[#allocation2 + $0x230] sm:$0xff]
        %v313 = vld [vmem:[#allocation2 + $0x238] sm:$0xff]
        %v314 = vld [vmem:[#allocation2 + $0x240] sm:$0xff]
        %v315 = vld [vmem:[#allocation2 + $0x248] sm:$0xff]
        %v316 = vld [vmem:[#allocation2 + $0x250] sm:$0xff]
        %v317 = vld [vmem:[#allocation2 + $0x258] sm:$0xff]
        %v318 = vld [vmem:[#allocation2 + $0x260] sm:$0xff]
        %v319 = vld [vmem:[#allocation2 + $0x268] sm:$0xff]
        %v320 = vld [vmem:[#allocation2 + $0x270] sm:$0xff]
        %v321 = vld [vmem:[#allocation2 + $0x278] sm:$0xff]
        %v322 = vld [vmem:[#allocation2 + $0x280] sm:$0xff]
        %v323 = vld [vmem:[#allocation2 + $0x288] sm:$0xff]
        %v324 = vld [vmem:[#allocation2 + $0x290] sm:$0xff]
        %v325 = vld [vmem:[#allocation2 + $0x298] sm:$0xff]
        %v326 = vld [vmem:[#allocation2 + $0x2a0] sm:$0xff]
        %v327 = vld [vmem:[#allocation2 + $0x2a8] sm:$0xff]
        %v328 = vld [vmem:[#allocation2 + $0x2b0] sm:$0xff]
        %v329 = vld [vmem:[#allocation2 + $0x2b8] sm:$0xff]
        %v330 = vld [vmem:[#allocation2 + $0x2c0] sm:$0xff]
        %v331 = vld [vmem:[#allocation2 + $0x2c8] sm:$0xff]
        %v332 = vld [vmem:[#allocation2 + $0x2d0] sm:$0xff]
        %v333 = vld [vmem:[#allocation2 + $0x2d8] sm:$0xff]
        %v334 = vld [vmem:[#allocation2 + $0x2e0] sm:$0xff]
        %v335 = vld [vmem:[#allocation2 + $0x2e8] sm:$0xff]
        %v336 = vld [vmem:[#allocation2 + $0x2f0] sm:$0xff]
        %v337 = vld [vmem:[#allocation2 + $0x2f8] sm:$0xff]
        %v338 = vld [vmem:[#allocation2 + $0x300] sm:$0xff]
        %v339 = vld [vmem:[#allocation2 + $0x308] sm:$0xff]
        %v340 = vld [vmem:[#allocation2 + $0x310] sm:$0xff]
        %v341 = vld [vmem:[#allocation2 + $0x318] sm:$0xff]
        %v342 = vld [vmem:[#allocation2 + $0x320] sm:$0xff]
        %v343 = vld [vmem:[#allocation2 + $0x328] sm:$0xff]
        %v344 = vld [vmem:[#allocation2 + $0x330] sm:$0xff]
        %v345 = vld [vmem:[#allocation2 + $0x338] sm:$0xff]
        %v346 = vld [vmem:[#allocation2 + $0x340] sm:$0xff]
        %v347 = vld [vmem:[#allocation2 + $0x348] sm:$0xff]
        %v348 = vld [vmem:[#allocation2 + $0x350] sm:$0xff]
        %v349 = vld [vmem:[#allocation2 + $0x358] sm:$0xff]
        %v350 = vld [vmem:[#allocation2 + $0x360] sm:$0xff]
        %v351 = vld [vmem:[#allocation2 + $0x368] sm:$0xff]
        %v352 = vld [vmem:[#allocation2 + $0x370] sm:$0xff]
        %v353 = vld [vmem:[#allocation2 + $0x378] sm:$0xff]
        %v354 = vld [vmem:[#allocation2 + $0x380] sm:$0xff]
        %v355 = vld [vmem:[#allocation2 + $0x388] sm:$0xff]
        %v356 = vld [vmem:[#allocation2 + $0x390] sm:$0xff]
        %v357 = vld [vmem:[#allocation2 + $0x398] sm:$0xff]
        %v358 = vld [vmem:[#allocation2 + $0x3a0] sm:$0xff]
        %v359 = vld [vmem:[#allocation2 + $0x3a8] sm:$0xff]
        %v360 = vld [vmem:[#allocation2 + $0x3b0] sm:$0xff]
        %v361 = vld [vmem:[#allocation2 + $0x3b8] sm:$0xff]
        %v362 = vld [vmem:[#allocation2 + $0x3c0] sm:$0xff]
        %v363 = vld [vmem:[#allocation2 + $0x3c8] sm:$0xff]
        %v364 = vld [vmem:[#allocation2 + $0x3d0] sm:$0xff]
        %v365 = vld [vmem:[#allocation2 + $0x3d8] sm:$0xff]
        %v366 = vld [vmem:[#allocation2 + $0x3e0] sm:$0xff]
        %v367 = vld [vmem:[#allocation2 + $0x3e8] sm:$0xff]
        %v368 = vld [vmem:[#allocation2 + $0x3f0] sm:$0xff]
        %v369 = vld [vmem:[#allocation2 + $0x3f8] sm:$0xff]
        %v498 = vunpack.c.l.b16 %v242
        %v499 = vunpack.c.h.b16 %v242
        %v500 = vunpack.c.l.b16 %v243
        %v501 = vunpack.c.h.b16 %v243
        %v502 = vunpack.c.l.b16 %v244
        %v503 = vunpack.c.h.b16 %v244
        %v504 = vunpack.c.l.b16 %v245
        %v505 = vunpack.c.h.b16 %v245
        %v506 = vunpack.c.l.b16 %v246
        %v507 = vunpack.c.h.b16 %v246
        %v508 = vunpack.c.l.b16 %v247
        %v509 = vunpack.c.h.b16 %v247
        %v510 = vunpack.c.l.b16 %v248
        %v511 = vunpack.c.h.b16 %v248
        %v512 = vunpack.c.l.b16 %v249
        %v513 = vunpack.c.h.b16 %v249
        %v514 = vunpack.c.l.b16 %v250
        %v515 = vunpack.c.h.b16 %v250
        %v516 = vunpack.c.l.b16 %v251
        %v517 = vunpack.c.h.b16 %v251
        %v518 = vunpack.c.l.b16 %v252
        %v519 = vunpack.c.h.b16 %v252
        %v520 = vunpack.c.l.b16 %v253
        %v521 = vunpack.c.h.b16 %v253
        %v522 = vunpack.c.l.b16 %v254
        %v523 = vunpack.c.h.b16 %v254
        %v524 = vunpack.c.l.b16 %v255
        %v525 = vunpack.c.h.b16 %v255
        %v526 = vunpack.c.l.b16 %v256
        %v527 = vunpack.c.h.b16 %v256
        %v528 = vunpack.c.l.b16 %v257
        %v529 = vunpack.c.h.b16 %v257
        %v530 = vunpack.c.l.b16 %v258
        %v531 = vunpack.c.h.b16 %v258
        %v532 = vunpack.c.l.b16 %v259
        %v533 = vunpack.c.h.b16 %v259
        %v534 = vunpack.c.l.b16 %v260
        %v535 = vunpack.c.h.b16 %v260
        %v536 = vunpack.c.l.b16 %v261
        %v537 = vunpack.c.h.b16 %v261
        %v538 = vunpack.c.l.b16 %v262
        %v539 = vunpack.c.h.b16 %v262
        %v540 = vunpack.c.l.b16 %v263
        %v541 = vunpack.c.h.b16 %v263
        %v542 = vunpack.c.l.b16 %v264
        %v543 = vunpack.c.h.b16 %v264
        %v544 = vunpack.c.l.b16 %v265
        %v545 = vunpack.c.h.b16 %v265
        %v546 = vunpack.c.l.b16 %v266
        %v547 = vunpack.c.h.b16 %v266
        %v548 = vunpack.c.l.b16 %v267
        %v549 = vunpack.c.h.b16 %v267
        %v550 = vunpack.c.l.b16 %v268
        %v551 = vunpack.c.h.b16 %v268
        %v552 = vunpack.c.l.b16 %v269
        %v553 = vunpack.c.h.b16 %v269
        %v554 = vunpack.c.l.b16 %v270
        %v555 = vunpack.c.h.b16 %v270
        %v556 = vunpack.c.l.b16 %v271
        %v557 = vunpack.c.h.b16 %v271
        %v558 = vunpack.c.l.b16 %v272
        %v559 = vunpack.c.h.b16 %v272
        %v560 = vunpack.c.l.b16 %v273
        %v561 = vunpack.c.h.b16 %v273
        %v562 = vunpack.c.l.b16 %v274
        %v563 = vunpack.c.h.b16 %v274
        %v564 = vunpack.c.l.b16 %v275
        %v565 = vunpack.c.h.b16 %v275
        %v566 = vunpack.c.l.b16 %v276
        %v567 = vunpack.c.h.b16 %v276
        %v568 = vunpack.c.l.b16 %v277
        %v569 = vunpack.c.h.b16 %v277
        %v570 = vunpack.c.l.b16 %v278
        %v571 = vunpack.c.h.b16 %v278
        %v572 = vunpack.c.l.b16 %v279
        %v573 = vunpack.c.h.b16 %v279
        %v574 = vunpack.c.l.b16 %v280
        %v575 = vunpack.c.h.b16 %v280
        %v576 = vunpack.c.l.b16 %v281
        %v577 = vunpack.c.h.b16 %v281
        %v578 = vunpack.c.l.b16 %v282
        %v579 = vunpack.c.h.b16 %v282
        %v580 = vunpack.c.l.b16 %v283
        %v581 = vunpack.c.h.b16 %v283
        %v582 = vunpack.c.l.b16 %v284
        %v583 = vunpack.c.h.b16 %v284
        %v584 = vunpack.c.l.b16 %v285
        %v585 = vunpack.c.h.b16 %v285
        %v586 = vunpack.c.l.b16 %v286
        %v587 = vunpack.c.h.b16 %v286
        %v588 = vunpack.c.l.b16 %v287
        %v589 = vunpack.c.h.b16 %v287
        %v590 = vunpack.c.l.b16 %v288
        %v591 = vunpack.c.h.b16 %v288
        %v592 = vunpack.c.l.b16 %v289
        %v593 = vunpack.c.h.b16 %v289
        %v594 = vunpack.c.l.b16 %v290
        %v595 = vunpack.c.h.b16 %v290
        %v596 = vunpack.c.l.b16 %v291
        %v597 = vunpack.c.h.b16 %v291
        %v598 = vunpack.c.l.b16 %v292
        %v599 = vunpack.c.h.b16 %v292
        %v600 = vunpack.c.l.b16 %v293
        %v601 = vunpack.c.h.b16 %v293
        %v602 = vunpack.c.l.b16 %v294
        %v603 = vunpack.c.h.b16 %v294
        %v604 = vunpack.c.l.b16 %v295
        %v605 = vunpack.c.h.b16 %v295
        %v606 = vunpack.c.l.b16 %v296
        %v607 = vunpack.c.h.b16 %v296
        %v608 = vunpack.c.l.b16 %v297
        %v609 = vunpack.c.h.b16 %v297
        %v610 = vunpack.c.l.b16 %v298
        %v611 = vunpack.c.h.b16 %v298
        %v612 = vunpack.c.l.b16 %v299
        %v613 = vunpack.c.h.b16 %v299
        %v614 = vunpack.c.l.b16 %v300
        %v615 = vunpack.c.h.b16 %v300
        %v616 = vunpack.c.l.b16 %v301
        %v617 = vunpack.c.h.b16 %v301
        %v618 = vunpack.c.l.b16 %v302
        %v619 = vunpack.c.h.b16 %v302
        %v620 = vunpack.c.l.b16 %v303
        %v621 = vunpack.c.h.b16 %v303
        %v622 = vunpack.c.l.b16 %v304
        %v623 = vunpack.c.h.b16 %v304
        %v624 = vunpack.c.l.b16 %v305
        %v625 = vunpack.c.h.b16 %v305
        %v626 = vunpack.c.l.b16 %v306
        %v627 = vunpack.c.h.b16 %v306
        %v628 = vunpack.c.l.b16 %v307
        %v629 = vunpack.c.h.b16 %v307
        %v630 = vunpack.c.l.b16 %v308
        %v631 = vunpack.c.h.b16 %v308
        %v632 = vunpack.c.l.b16 %v309
        %v633 = vunpack.c.h.b16 %v309
        %v634 = vunpack.c.l.b16 %v310
        %v635 = vunpack.c.h.b16 %v310
        %v636 = vunpack.c.l.b16 %v311
        %v637 = vunpack.c.h.b16 %v311
        %v638 = vunpack.c.l.b16 %v312
        %v639 = vunpack.c.h.b16 %v312
        %v640 = vunpack.c.l.b16 %v313
        %v641 = vunpack.c.h.b16 %v313
        %v642 = vunpack.c.l.b16 %v314
        %v643 = vunpack.c.h.b16 %v314
        %v644 = vunpack.c.l.b16 %v315
        %v645 = vunpack.c.h.b16 %v315
        %v646 = vunpack.c.l.b16 %v316
        %v647 = vunpack.c.h.b16 %v316
        %v648 = vunpack.c.l.b16 %v317
        %v649 = vunpack.c.h.b16 %v317
        %v650 = vunpack.c.l.b16 %v318
        %v651 = vunpack.c.h.b16 %v318
        %v652 = vunpack.c.l.b16 %v319
        %v653 = vunpack.c.h.b16 %v319
        %v654 = vunpack.c.l.b16 %v320
        %v655 = vunpack.c.h.b16 %v320
        %v656 = vunpack.c.l.b16 %v321
        %v657 = vunpack.c.h.b16 %v321
        %v658 = vunpack.c.l.b16 %v322
        %v659 = vunpack.c.h.b16 %v322
        %v660 = vunpack.c.l.b16 %v323
        %v661 = vunpack.c.h.b16 %v323
        %v662 = vunpack.c.l.b16 %v324
        %v663 = vunpack.c.h.b16 %v324
        %v664 = vunpack.c.l.b16 %v325
        %v665 = vunpack.c.h.b16 %v325
        %v666 = vunpack.c.l.b16 %v326
        %v667 = vunpack.c.h.b16 %v326
        %v668 = vunpack.c.l.b16 %v327
        %v669 = vunpack.c.h.b16 %v327
        %v670 = vunpack.c.l.b16 %v328
        %v671 = vunpack.c.h.b16 %v328
        %v672 = vunpack.c.l.b16 %v329
        %v673 = vunpack.c.h.b16 %v329
        %v674 = vunpack.c.l.b16 %v330
        %v675 = vunpack.c.h.b16 %v330
        %v676 = vunpack.c.l.b16 %v331
        %v677 = vunpack.c.h.b16 %v331
        %v678 = vunpack.c.l.b16 %v332
        %v679 = vunpack.c.h.b16 %v332
        %v680 = vunpack.c.l.b16 %v333
        %v681 = vunpack.c.h.b16 %v333
        %v682 = vunpack.c.l.b16 %v334
        %v683 = vunpack.c.h.b16 %v334
        %v684 = vunpack.c.l.b16 %v335
        %v685 = vunpack.c.h.b16 %v335
        %v686 = vunpack.c.l.b16 %v336
        %v687 = vunpack.c.h.b16 %v336
        %v688 = vunpack.c.l.b16 %v337
        %v689 = vunpack.c.h.b16 %v337
        %v690 = vunpack.c.l.b16 %v338
        %v691 = vunpack.c.h.b16 %v338
        %v692 = vunpack.c.l.b16 %v339
        %v693 = vunpack.c.h.b16 %v339
        %v694 = vunpack.c.l.b16 %v340
        %v695 = vunpack.c.h.b16 %v340
        %v696 = vunpack.c.l.b16 %v341
        %v697 = vunpack.c.h.b16 %v341
        %v698 = vunpack.c.l.b16 %v342
        %v699 = vunpack.c.h.b16 %v342
        %v700 = vunpack.c.l.b16 %v343
        %v701 = vunpack.c.h.b16 %v343
        %v702 = vunpack.c.l.b16 %v344
        %v703 = vunpack.c.h.b16 %v344
        %v704 = vunpack.c.l.b16 %v345
        %v705 = vunpack.c.h.b16 %v345
        %v706 = vunpack.c.l.b16 %v346
        %v707 = vunpack.c.h.b16 %v346
        %v708 = vunpack.c.l.b16 %v347
        %v709 = vunpack.c.h.b16 %v347
        %v710 = vunpack.c.l.b16 %v348
        %v711 = vunpack.c.h.b16 %v348
        %v712 = vunpack.c.l.b16 %v349
        %v713 = vunpack.c.h.b16 %v349
        %v714 = vunpack.c.l.b16 %v350
        %v715 = vunpack.c.h.b16 %v350
        %v716 = vunpack.c.l.b16 %v351
        %v717 = vunpack.c.h.b16 %v351
        %v718 = vunpack.c.l.b16 %v352
        %v719 = vunpack.c.h.b16 %v352
        %v720 = vunpack.c.l.b16 %v353
        %v721 = vunpack.c.h.b16 %v353
        %v722 = vunpack.c.l.b16 %v354
        %v723 = vunpack.c.h.b16 %v354
        %v724 = vunpack.c.l.b16 %v355
        %v725 = vunpack.c.h.b16 %v355
        %v726 = vunpack.c.l.b16 %v356
        %v727 = vunpack.c.h.b16 %v356
        %v728 = vunpack.c.l.b16 %v357
        %v729 = vunpack.c.h.b16 %v357
        %v730 = vunpack.c.l.b16 %v358
        %v731 = vunpack.c.h.b16 %v358
        %v732 = vunpack.c.l.b16 %v359
        %v733 = vunpack.c.h.b16 %v359
        %v734 = vunpack.c.l.b16 %v360
        %v735 = vunpack.c.h.b16 %v360
        %v736 = vunpack.c.l.b16 %v361
        %v737 = vunpack.c.h.b16 %v361
        %v738 = vunpack.c.l.b16 %v362
        %v739 = vunpack.c.h.b16 %v362
        %v740 = vunpack.c.l.b16 %v363
        %v741 = vunpack.c.h.b16 %v363
        %v742 = vunpack.c.l.b16 %v364
        %v743 = vunpack.c.h.b16 %v364
        %v744 = vunpack.c.l.b16 %v365
        %v745 = vunpack.c.h.b16 %v365
        %v746 = vunpack.c.l.b16 %v366
        %v747 = vunpack.c.h.b16 %v366
        %v748 = vunpack.c.l.b16 %v367
        %v749 = vunpack.c.h.b16 %v367
        %v750 = vunpack.c.l.b16 %v368
        %v751 = vunpack.c.h.b16 %v368
        %v752 = vunpack.c.l.b16 %v369
        %v753 = vunpack.c.h.b16 %v369
        %v754 = vpack.c.b16 %v506, %v498
        %v755 = vpack.c.b16 %v507, %v499
        %v756 = vpack.c.b16 %v508, %v500
        %v757 = vpack.c.b16 %v509, %v501
        %v758 = vpack.c.b16 %v510, %v502
        %v759 = vpack.c.b16 %v511, %v503
        %v760 = vpack.c.b16 %v512, %v504
        %v761 = vpack.c.b16 %v513, %v505
        %v762 = vpack.c.b16 %v522, %v514
        %v763 = vpack.c.b16 %v523, %v515
        %v764 = vpack.c.b16 %v524, %v516
        %v765 = vpack.c.b16 %v525, %v517
        %v766 = vpack.c.b16 %v526, %v518
        %v767 = vpack.c.b16 %v527, %v519
        %v768 = vpack.c.b16 %v528, %v520
        %v769 = vpack.c.b16 %v529, %v521
        %v770 = vpack.c.b16 %v538, %v530
        %v771 = vpack.c.b16 %v539, %v531
        %v772 = vpack.c.b16 %v540, %v532
        %v773 = vpack.c.b16 %v541, %v533
        %v774 = vpack.c.b16 %v542, %v534
        %v775 = vpack.c.b16 %v543, %v535
        %v776 = vpack.c.b16 %v544, %v536
        %v777 = vpack.c.b16 %v545, %v537
        %v778 = vpack.c.b16 %v554, %v546
        %v779 = vpack.c.b16 %v555, %v547
        %v780 = vpack.c.b16 %v556, %v548
        %v781 = vpack.c.b16 %v557, %v549
        %v782 = vpack.c.b16 %v558, %v550
        %v783 = vpack.c.b16 %v559, %v551
        %v784 = vpack.c.b16 %v560, %v552
        %v785 = vpack.c.b16 %v561, %v553
        %v786 = vpack.c.b16 %v570, %v562
        %v787 = vpack.c.b16 %v571, %v563
        %v788 = vpack.c.b16 %v572, %v564
        %v789 = vpack.c.b16 %v573, %v565
        %v790 = vpack.c.b16 %v574, %v566
        %v791 = vpack.c.b16 %v575, %v567
        %v792 = vpack.c.b16 %v576, %v568
        %v793 = vpack.c.b16 %v577, %v569
        %v794 = vpack.c.b16 %v586, %v578
        %v795 = vpack.c.b16 %v587, %v579
        %v796 = vpack.c.b16 %v588, %v580
        %v797 = vpack.c.b16 %v589, %v581
        %v798 = vpack.c.b16 %v590, %v582
        %v799 = vpack.c.b16 %v591, %v583
        %v800 = vpack.c.b16 %v592, %v584
        %v801 = vpack.c.b16 %v593, %v585
        %v802 = vpack.c.b16 %v602, %v594
        %v803 = vpack.c.b16 %v603, %v595
        %v804 = vpack.c.b16 %v604, %v596
        %v805 = vpack.c.b16 %v605, %v597
        %v806 = vpack.c.b16 %v606, %v598
        %v807 = vpack.c.b16 %v607, %v599
        %v808 = vpack.c.b16 %v608, %v600
        %v809 = vpack.c.b16 %v609, %v601
        %v810 = vpack.c.b16 %v618, %v610
        %v811 = vpack.c.b16 %v619, %v611
        %v812 = vpack.c.b16 %v620, %v612
        %v813 = vpack.c.b16 %v621, %v613
        %v814 = vpack.c.b16 %v622, %v614
        %v815 = vpack.c.b16 %v623, %v615
        %v816 = vpack.c.b16 %v624, %v616
        %v817 = vpack.c.b16 %v625, %v617
        %v818 = vpack.c.b16 %v634, %v626
        %v819 = vpack.c.b16 %v635, %v627
        %v820 = vpack.c.b16 %v636, %v628
        %v821 = vpack.c.b16 %v637, %v629
        %v822 = vpack.c.b16 %v638, %v630
        %v823 = vpack.c.b16 %v639, %v631
        %v824 = vpack.c.b16 %v640, %v632
        %v825 = vpack.c.b16 %v641, %v633
        %v826 = vpack.c.b16 %v650, %v642
        %v827 = vpack.c.b16 %v651, %v643
        %v828 = vpack.c.b16 %v652, %v644
        %v829 = vpack.c.b16 %v653, %v645
        %v830 = vpack.c.b16 %v654, %v646
        %v831 = vpack.c.b16 %v655, %v647
        %v832 = vpack.c.b16 %v656, %v648
        %v833 = vpack.c.b16 %v657, %v649
        %v834 = vpack.c.b16 %v666, %v658
        %v835 = vpack.c.b16 %v667, %v659
        %v836 = vpack.c.b16 %v668, %v660
        %v837 = vpack.c.b16 %v669, %v661
        %v838 = vpack.c.b16 %v670, %v662
        %v839 = vpack.c.b16 %v671, %v663
        %v840 = vpack.c.b16 %v672, %v664
        %v841 = vpack.c.b16 %v673, %v665
        %v842 = vpack.c.b16 %v682, %v674
        %v843 = vpack.c.b16 %v683, %v675
        %v844 = vpack.c.b16 %v684, %v676
        %v845 = vpack.c.b16 %v685, %v677
        %v846 = vpack.c.b16 %v686, %v678
        %v847 = vpack.c.b16 %v687, %v679
        %v848 = vpack.c.b16 %v688, %v680
        %v849 = vpack.c.b16 %v689, %v681
        %v850 = vpack.c.b16 %v698, %v690
        %v851 = vpack.c.b16 %v699, %v691
        %v852 = vpack.c.b16 %v700, %v692
        %v853 = vpack.c.b16 %v701, %v693
        %v854 = vpack.c.b16 %v702, %v694
        %v855 = vpack.c.b16 %v703, %v695
        %v856 = vpack.c.b16 %v704, %v696
        %v857 = vpack.c.b16 %v705, %v697
        %v858 = vpack.c.b16 %v714, %v706
        %v859 = vpack.c.b16 %v715, %v707
        %v860 = vpack.c.b16 %v716, %v708
        %v861 = vpack.c.b16 %v717, %v709
        %v862 = vpack.c.b16 %v718, %v710
        %v863 = vpack.c.b16 %v719, %v711
        %v864 = vpack.c.b16 %v720, %v712
        %v865 = vpack.c.b16 %v721, %v713
        %v866 = vpack.c.b16 %v730, %v722
        %v867 = vpack.c.b16 %v731, %v723
        %v868 = vpack.c.b16 %v732, %v724
        %v869 = vpack.c.b16 %v733, %v725
        %v870 = vpack.c.b16 %v734, %v726
        %v871 = vpack.c.b16 %v735, %v727
        %v872 = vpack.c.b16 %v736, %v728
        %v873 = vpack.c.b16 %v737, %v729
        %v874 = vpack.c.b16 %v746, %v738
        %v875 = vpack.c.b16 %v747, %v739
        %v876 = vpack.c.b16 %v748, %v740
        %v877 = vpack.c.b16 %v749, %v741
        %v878 = vpack.c.b16 %v750, %v742
        %v879 = vpack.c.b16 %v751, %v743
        %v880 = vpack.c.b16 %v752, %v744
        %v881 = vpack.c.b16 %v753, %v745
        %1010 = vmatprep.subr.bf16.mxu0 %v811
        %1011 = vmatpush1.bf16.msra.mxu0 %v810
        %1012 = vmatprep.subr.bf16.mxu0 %v803
        %1013 = vmatpush1.bf16.msra.mxu0 %v802
        %1014 = vmatprep.subr.bf16.mxu0 %v795
        %1015 = vmatpush1.bf16.msra.mxu0 %v794
        %1016 = vmatprep.subr.bf16.mxu0 %v787
        %1017 = vmatpush1.bf16.msra.mxu0 %v786
        %1018 = vmatprep.subr.bf16.mxu0 %v779
        %1019 = vmatpush1.bf16.msra.mxu0 %v778
        %1020 = vmatprep.subr.bf16.mxu0 %v771
        %1021 = vmatpush1.bf16.msra.mxu0 %v770
        %1022 = vmatprep.subr.bf16.mxu0 %v763
        %1023 = vmatpush1.bf16.msra.mxu0 %v762
        %1024 = vmatprep.subr.bf16.mxu0 %v755
        %1025 = vmatpush1.bf16.msra.mxu0 %v754
        %1026 = vmatprep.subr.bf16.mxu0 %v875
        %1027 = vmatpush2.bf16.msra.mxu0 %v874
        %1028 = vmatprep.subr.bf16.mxu0 %v867
        %1029 = vmatpush2.bf16.msra.mxu0 %v866
        %1030 = vmatprep.subr.bf16.mxu0 %v859
        %1031 = vmatpush2.bf16.msra.mxu0 %v858
        %1032 = vmatprep.subr.bf16.mxu0 %v851
        %1033 = vmatpush2.bf16.msra.mxu0 %v850
        %1034 = vmatprep.subr.bf16.mxu0 %v843
        %1035 = vmatpush2.bf16.msra.mxu0 %v842
        %1036 = vmatprep.subr.bf16.mxu0 %v835
        %1037 = vmatpush2.bf16.msra.mxu0 %v834
        %1038 = vmatprep.subr.bf16.mxu0 %v827
        %1039 = vmatpush2.bf16.msra.mxu0 %v826
        %1040 = vmatprep.subr.bf16.mxu0 %v819
        %1041 = vmatpush2.bf16.msra.mxu0 %v818
        %1042 = vmatprep.mubr.bf16.mxu0 %v241
        %1043 = vmatmul.mubr.bf16.gmra.mxu0 %v240
        %v1044 = vpop.f32.mrf.mxu0
        %v1045 = vadd.f32 0.0, %v1044
        %v1046 = vpop.f32.mrf.mxu0
        %v1047 = vadd.f32 0.0, %v1046
        %v1048 = vpop.f32.mrf.mxu0
        %v1049 = vpop.f32.mrf.mxu0
        %1050 = vdwg.mxu0
        %1051 = vmatprep.subr.bf16.mxu0 %v813
        %1052 = vmatpush1.bf16.msra.mxu0 %v812
        %1053 = vmatprep.subr.bf16.mxu0 %v805
        %1054 = vmatpush1.bf16.msra.mxu0 %v804
        %1055 = vmatprep.subr.bf16.mxu0 %v797
        %1056 = vmatpush1.bf16.msra.mxu0 %v796
        %1057 = vmatprep.subr.bf16.mxu0 %v789
        %1058 = vmatpush1.bf16.msra.mxu0 %v788
        %1059 = vmatprep.subr.bf16.mxu0 %v781
        %1060 = vmatpush1.bf16.msra.mxu0 %v780
        %1061 = vmatprep.subr.bf16.mxu0 %v773
        %1062 = vmatpush1.bf16.msra.mxu0 %v772
        %1063 = vmatprep.subr.bf16.mxu0 %v765
        %1064 = vmatpush1.bf16.msra.mxu0 %v764
        %1065 = vmatprep.subr.bf16.mxu0 %v757
        %1066 = vmatpush1.bf16.msra.mxu0 %v756
        %1067 = vmatprep.subr.bf16.mxu0 %v877
        %1068 = vmatpush2.bf16.msra.mxu0 %v876
        %1069 = vmatprep.subr.bf16.mxu0 %v869
        %1070 = vmatpush2.bf16.msra.mxu0 %v868
        %1071 = vmatprep.subr.bf16.mxu0 %v861
        %1072 = vmatpush2.bf16.msra.mxu0 %v860
        %1073 = vmatprep.subr.bf16.mxu0 %v853
        %1074 = vmatpush2.bf16.msra.mxu0 %v852
        %1075 = vmatprep.subr.bf16.mxu0 %v845
        %1076 = vmatpush2.bf16.msra.mxu0 %v844
        %1077 = vmatprep.subr.bf16.mxu0 %v837
        %1078 = vmatpush2.bf16.msra.mxu0 %v836
        %1079 = vmatprep.subr.bf16.mxu0 %v829
        %1080 = vmatpush2.bf16.msra.mxu0 %v828
        %1081 = vmatprep.subr.bf16.mxu0 %v821
        %1082 = vmatpush2.bf16.msra.mxu0 %v820
        %1083 = vmatprep.mubr.bf16.mxu0 %v241
        %1084 = vmatmul.mubr.bf16.gmra.mxu0 %v240
        %v1085 = vpop.f32.mrf.mxu0
        %v1086 = vadd.f32 0.0, %v1085
        %v1087 = vpop.f32.mrf.mxu0
        %v1088 = vadd.f32 0.0, %v1087
        %v1089 = vpop.f32.mrf.mxu0
        %v1090 = vpop.f32.mrf.mxu0
        %1091 = vdwg.mxu0
        %1092 = vmatprep.subr.bf16.mxu0 %v815
        %1093 = vmatpush1.bf16.msra.mxu0 %v814
        %1094 = vmatprep.subr.bf16.mxu0 %v807
        %1095 = vmatpush1.bf16.msra.mxu0 %v806
        %1096 = vmatprep.subr.bf16.mxu0 %v799
        %1097 = vmatpush1.bf16.msra.mxu0 %v798
        %1098 = vmatprep.subr.bf16.mxu0 %v791
        %1099 = vmatpush1.bf16.msra.mxu0 %v790
        %1100 = vmatprep.subr.bf16.mxu0 %v783
        %1101 = vmatpush1.bf16.msra.mxu0 %v782
        %1102 = vmatprep.subr.bf16.mxu0 %v775
        %1103 = vmatpush1.bf16.msra.mxu0 %v774
        %1104 = vmatprep.subr.bf16.mxu0 %v767
        %1105 = vmatpush1.bf16.msra.mxu0 %v766
        %1106 = vmatprep.subr.bf16.mxu0 %v759
        %1107 = vmatpush1.bf16.msra.mxu0 %v758
        %1108 = vmatprep.subr.bf16.mxu0 %v879
        %1109 = vmatpush2.bf16.msra.mxu0 %v878
        %1110 = vmatprep.subr.bf16.mxu0 %v871
        %1111 = vmatpush2.bf16.msra.mxu0 %v870
        %1112 = vmatprep.subr.bf16.mxu0 %v863
        %1113 = vmatpush2.bf16.msra.mxu0 %v862
        %1114 = vmatprep.subr.bf16.mxu0 %v855
        %1115 = vmatpush2.bf16.msra.mxu0 %v854
        %1116 = vmatprep.subr.bf16.mxu0 %v847
        %1117 = vmatpush2.bf16.msra.mxu0 %v846
        %1118 = vmatprep.subr.bf16.mxu0 %v839
        %1119 = vmatpush2.bf16.msra.mxu0 %v838
        %1120 = vmatprep.subr.bf16.mxu0 %v831
        %1121 = vmatpush2.bf16.msra.mxu0 %v830
        %1122 = vmatprep.subr.bf16.mxu0 %v823
        %1123 = vmatpush2.bf16.msra.mxu0 %v822
        %1124 = vmatprep.mubr.bf16.mxu0 %v241
        %1125 = vmatmul.mubr.bf16.gmra.mxu0 %v240
        %v1126 = vpop.f32.mrf.mxu0
        %v1127 = vadd.f32 0.0, %v1126
        %v1128 = vpop.f32.mrf.mxu0
        %v1129 = vadd.f32 0.0, %v1128
        %v1130 = vpop.f32.mrf.mxu0
        %v1131 = vpop.f32.mrf.mxu0
        %1132 = vdwg.mxu0
        %1133 = vmatprep.subr.bf16.mxu0 %v817
        %1134 = vmatpush1.bf16.msra.mxu0 %v816
        %1135 = vmatprep.subr.bf16.mxu0 %v809
        %1136 = vmatpush1.bf16.msra.mxu0 %v808
        %1137 = vmatprep.subr.bf16.mxu0 %v801
        %1138 = vmatpush1.bf16.msra.mxu0 %v800
        %1139 = vmatprep.subr.bf16.mxu0 %v793
        %1140 = vmatpush1.bf16.msra.mxu0 %v792
        %1141 = vmatprep.subr.bf16.mxu0 %v785
        %1142 = vmatpush1.bf16.msra.mxu0 %v784
        %1143 = vmatprep.subr.bf16.mxu0 %v777
        %1144 = vmatpush1.bf16.msra.mxu0 %v776
        %1145 = vmatprep.subr.bf16.mxu0 %v769
        %1146 = vmatpush1.bf16.msra.mxu0 %v768
        %1147 = vmatprep.subr.bf16.mxu0 %v761
        %1148 = vmatpush1.bf16.msra.mxu0 %v760
        %1149 = vmatprep.subr.bf16.mxu0 %v881
        %1150 = vmatpush2.bf16.msra.mxu0 %v880
        %1151 = vmatprep.subr.bf16.mxu0 %v873
        %1152 = vmatpush2.bf16.msra.mxu0 %v872
        %1153 = vmatprep.subr.bf16.mxu0 %v865
        %1154 = vmatpush2.bf16.msra.mxu0 %v864
        %1155 = vmatprep.subr.bf16.mxu0 %v857
        %1156 = vmatpush2.bf16.msra.mxu0 %v856
        %1157 = vmatprep.subr.bf16.mxu0 %v849
        %1158 = vmatpush2.bf16.msra.mxu0 %v848
        %1159 = vmatprep.subr.bf16.mxu0 %v841
        %1160 = vmatpush2.bf16.msra.mxu0 %v840
        %1161 = vmatprep.subr.bf16.mxu0 %v833
        %1162 = vmatpush2.bf16.msra.mxu0 %v832
        %1163 = vmatprep.subr.bf16.mxu0 %v825
        %1164 = vmatpush2.bf16.msra.mxu0 %v824
        %1165 = vmatprep.mubr.bf16.mxu0 %v241
        %1166 = vmatmul.mubr.bf16.gmra.mxu0 %v240
        %v1167 = vpop.f32.mrf.mxu0
        %v1168 = vadd.f32 0.0, %v1167
        %v1169 = vpop.f32.mrf.mxu0
        %v1170 = vadd.f32 0.0, %v1169
        %v1171 = vpop.f32.mrf.mxu0
        %v1172 = vpop.f32.mrf.mxu0
        %1173 = vdwg.mxu0
        %v1174 = vmax.f32 %v1045, %v1086
        %v1175 = vmax.f32 %v1047, %v1088
        %v1176 = vmax.f32 %v1127, %v1168
        %v1177 = vmax.f32 %v1129, %v1170
        %v1178 = vmax.f32 %v1174, %v1176
        %v1179 = vmax.f32 %v1175, %v1177
        %v1180 = vld [vmem:[%s2] sm:$0x3]
        %v1182 = vlaneseq
        %v1183 = vshrl.u32 %v1182, 7
        %v1184 = vsub.s32 0, %v1183
        %v1185 = vrot.slane %v1180, %v1184
        %v1186 = vlaneseq
        %v1187 = vshrl.u32 %v1186, 7
        %v1188 = vsub.s32 1, %v1187
        %v1189 = vrot.slane %v1180, %v1188
        %v1192 = vadd.f32 %v1178, %v1185
        %v1193 = vadd.f32 %v1179, %v1189
        %v1194 = vmax.f32 %v1192, 0.0
        %v1195 = vmax.f32 %v1193, 0.0
        %v1196 = vld [vmem:[%s3] sm:$0xff]
        %v1197 = vld [vmem:[%s3 + $0x8] sm:$0xff]
        %v1198 = vld [vmem:[%s3 + $0x10] sm:$0xff]
        %v1199 = vld [vmem:[%s3 + $0x18] sm:$0xff]
        %v1200 = vld [vmem:[%s3 + $0x20] sm:$0xff]
        %v1201 = vld [vmem:[%s3 + $0x28] sm:$0xff]
        %v1202 = vld [vmem:[%s3 + $0x30] sm:$0xff]
        %v1203 = vld [vmem:[%s3 + $0x38] sm:$0xff]
        %v1204 = vld [vmem:[%s3 + $0x40] sm:$0xff]
        %v1205 = vld [vmem:[%s3 + $0x48] sm:$0xff]
        %v1206 = vld [vmem:[%s3 + $0x50] sm:$0xff]
        %v1207 = vld [vmem:[%s3 + $0x58] sm:$0xff]
        %v1208 = vld [vmem:[%s3 + $0x60] sm:$0xff]
        %v1209 = vld [vmem:[%s3 + $0x68] sm:$0xff]
        %v1210 = vld [vmem:[%s3 + $0x70] sm:$0xff]
        %v1211 = vld [vmem:[%s3 + $0x78] sm:$0xff]
        %v1212 = vld [vmem:[%s3 + $0x80] sm:$0xff]
        %v1213 = vld [vmem:[%s3 + $0x88] sm:$0xff]
        %v1214 = vld [vmem:[%s3 + $0x90] sm:$0xff]
        %v1215 = vld [vmem:[%s3 + $0x98] sm:$0xff]
        %v1216 = vld [vmem:[%s3 + $0xa0] sm:$0xff]
        %v1217 = vld [vmem:[%s3 + $0xa8] sm:$0xff]
        %v1218 = vld [vmem:[%s3 + $0xb0] sm:$0xff]
        %v1219 = vld [vmem:[%s3 + $0xb8] sm:$0xff]
        %v1220 = vld [vmem:[%s3 + $0xc0] sm:$0xff]
        %v1221 = vld [vmem:[%s3 + $0xc8] sm:$0xff]
        %v1222 = vld [vmem:[%s3 + $0xd0] sm:$0xff]
        %v1223 = vld [vmem:[%s3 + $0xd8] sm:$0xff]
        %v1224 = vld [vmem:[%s3 + $0xe0] sm:$0xff]
        %v1225 = vld [vmem:[%s3 + $0xe8] sm:$0xff]
        %v1226 = vld [vmem:[%s3 + $0xf0] sm:$0xff]
        %v1227 = vld [vmem:[%s3 + $0xf8] sm:$0xff]
        %v1228 = vld [vmem:[%s4] sm:$0x1]
        %v1230 = vlaneseq
        %v1231 = vshrl.u32 %v1230, 7
        %v1232 = vsub.s32 0, %v1231
        %v1233 = vrot.slane %v1228, %v1232
        %1235 = vmatprep.subr.mxu0 0.0
        %1236 = vmatpush1.msra.mxu0 %v1211
        %1237 = vmatprep.subr.mxu0 0.0
        %1238 = vmatpush1.msra.mxu0 %v1210
        %1239 = vmatprep.subr.mxu0 0.0
        %1240 = vmatpush1.msra.mxu0 %v1209
        %1241 = vmatprep.subr.mxu0 0.0
        %1242 = vmatpush1.msra.mxu0 %v1208
        %1243 = vmatprep.subr.mxu0 0.0
        %1244 = vmatpush1.msra.mxu0 %v1207
        %1245 = vmatprep.subr.mxu0 0.0
        %1246 = vmatpush1.msra.mxu0 %v1206
        %1247 = vmatprep.subr.mxu0 0.0
        %1248 = vmatpush1.msra.mxu0 %v1205
        %1249 = vmatprep.subr.mxu0 0.0
        %1250 = vmatpush1.msra.mxu0 %v1204
        %1251 = vmatprep.subr.mxu0 0.0
        %1252 = vmatpush1.msra.mxu0 %v1203
        %1253 = vmatprep.subr.mxu0 0.0
        %1254 = vmatpush1.msra.mxu0 %v1202
        %1255 = vmatprep.subr.mxu0 0.0
        %1256 = vmatpush1.msra.mxu0 %v1201
        %1257 = vmatprep.subr.mxu0 0.0
        %1258 = vmatpush1.msra.mxu0 %v1200
        %1259 = vmatprep.subr.mxu0 0.0
        %1260 = vmatpush1.msra.mxu0 %v1199
        %1261 = vmatprep.subr.mxu0 0.0
        %1262 = vmatpush1.msra.mxu0 %v1198
        %1263 = vmatprep.subr.mxu0 0.0
        %1264 = vmatpush1.msra.mxu0 %v1197
        %1265 = vmatprep.subr.mxu0 0.0
        %1266 = vmatpush1.msra.mxu0 %v1196
        %1267 = vmatprep.subr.mxu0 0.0
        %1268 = vmatpush2.msra.mxu0 %v1227
        %1269 = vmatprep.subr.mxu0 0.0
        %1270 = vmatpush2.msra.mxu0 %v1226
        %1271 = vmatprep.subr.mxu0 0.0
        %1272 = vmatpush2.msra.mxu0 %v1225
        %1273 = vmatprep.subr.mxu0 0.0
        %1274 = vmatpush2.msra.mxu0 %v1224
        %1275 = vmatprep.subr.mxu0 0.0
        %1276 = vmatpush2.msra.mxu0 %v1223
        %1277 = vmatprep.subr.mxu0 0.0
        %1278 = vmatpush2.msra.mxu0 %v1222
        %1279 = vmatprep.subr.mxu0 0.0
        %1280 = vmatpush2.msra.mxu0 %v1221
        %1281 = vmatprep.subr.mxu0 0.0
        %1282 = vmatpush2.msra.mxu0 %v1220
        %1283 = vmatprep.subr.mxu0 0.0
        %1284 = vmatpush2.msra.mxu0 %v1219
        %1285 = vmatprep.subr.mxu0 0.0
        %1286 = vmatpush2.msra.mxu0 %v1218
        %1287 = vmatprep.subr.mxu0 0.0
        %1288 = vmatpush2.msra.mxu0 %v1217
        %1289 = vmatprep.subr.mxu0 0.0
        %1290 = vmatpush2.msra.mxu0 %v1216
        %1291 = vmatprep.subr.mxu0 0.0
        %1292 = vmatpush2.msra.mxu0 %v1215
        %1293 = vmatprep.subr.mxu0 0.0
        %1294 = vmatpush2.msra.mxu0 %v1214
        %1295 = vmatprep.subr.mxu0 0.0
        %1296 = vmatpush2.msra.mxu0 %v1213
        %1297 = vmatprep.subr.mxu0 0.0
        %1298 = vmatpush2.msra.mxu0 %v1212
        %1299 = vmatprep.mubr.f32.mxu0 %v1195
        %1300 = vmatmul.mubr.f32.gmra.mxu0 %v1194
        %v1301 = vpop.f32.mrf.mxu0
        %v1302 = vadd.f32 %v1233, %v1301
        %v1303 = vpop.f32.mrf.mxu0
        %1304 = vdwg.mxu0
        %vm1305 = vcmask 64512
        %v1306 = vsel %vm1305, %v1302, -inf
        %1307 = vmax.xlane.f32.xlu0 %v1306
        %v1308 = vpop.xlane.xlu0 %1307
        %v1309 = vsub.f32 %v1302, %v1308
        %v1310 = vmul.f32 %v1309, 1.442695
        %v1311 = vpow.pop %v1310
        %v1312 = vsel %vm1305, %v1311, 0.0
        %1313 = vadd.xlane.f32.xlu0 %v1312
        %v1314 = vpop.xlane.xlu0 %1313
        %v1315 = vlog2.pop %v1314
        %v1316 = vmul.f32 %v1315, 0.6931472
        %v1317 = vsub.f32 %v1309, %v1316
        %1318 = vst.msk [vmem:[%s237] sm:$0xff] %vm1305, %v1317
        %p1319 = scmp.lt.s32.totalorder %s17, 1
        %s1320 = scalar_select %p1319, %s17, 1
        %s1321 = smul.addr %s1320, 8
        %s1322 = scalar_lea.vmem %s5, %s1321
        // Predicated region
        $region45: #{sentence_extractor_forward.1} parent=39 // pred_check
          %p1323 = pneg %p145
        $region46: #{sentence_extractor_forward.1} parent=39 // pred_check_branch
          %1325 = sbr.rel (%p1323) target = $region48
        $region47: #{sentence_extractor_forward.1} parent=39 // pred_region
          _
        $region48: #{sentence_extractor_forward.1} parent=39 // pred_fallthru
          _
      $region40: #{sentence_extractor_forward.1} parent=5 // pred_fallthru
        _
      %p1326 = scmp.le.s32.totalorder 2, %s12
      // Predicated region
      $region49: #{sentence_extractor_forward.1} parent=5 // pred_check
        %p1327 = pneg %p1326
      $region50: #{sentence_extractor_forward.1} parent=5 // pred_check_branch
        %1329 = sbr.rel (%p1327) target = $region52
      $region51: #{sentence_extractor_forward.1} parent=5 // pred_region
        %s1330 = ssub.s32 %s12, 2
        // Predicated region
        $region53: #{sentence_extractor_forward.1} parent=51 // pred_check
          %p1331 = pneg %p151
        $region54: #{sentence_extractor_forward.1} parent=51 // pred_check_branch
          %1333 = sbr.rel (%p1331) target = $region56
        $region55: #{sentence_extractor_forward.1} parent=51 // pred_region
          %p1334 = scmp.lt.s32.totalorder %s18, 1
          %s1335 = scalar_select %p1334, %s18, 1
          %s1336 = smul.addr %s1335, 8
          %s1337 = scalar_lea.vmem %s5, %s1336
        $region56: #{sentence_extractor_forward.1} parent=51 // pred_fallthru
          _
      $region52: #{sentence_extractor_forward.1} parent=5 // pred_fallthru
        _
    $region6: #{sentence_extractor_forward.1} parent=1 // loop_footer
      %s16 = sadd.s32 1, %s12
    $region7: #{sentence_extractor_forward.1} parent=1 // loop_footer_branch
      %11 = sbr.rel target = $region3
    $region8: #{sentence_extractor_forward.1} parent=1 // loop_exit
      _
    %1338 = vsyncpa [#allocation3], 1
    %s1339 = scalar_lea.sflag [#allocation3], 1
    %1340 = vsyncpa %s1339, 1

</llo_original>
